<compile_context>
chip_gen: v5e
topology: v5e:2x2
jax: 0.10.0
libtpu: 0.0.40
codegen_flags: <defaults>
</compile_context>

<pallas_src>
import jax
import jax.numpy as jnp
from jax.experimental import pallas as pl
from jax.experimental.pallas import tpu as pltpu

_LANE = 128
_MAX_TILE_M = 8192  # 8192 rows * 32 feats * 4 B = 1 MiB per x tile (x2 buffers)


def _pre_predictions_kernel(x_ref, w1_ref, b1_ref, w2_ref, b2_ref, o_ref):
    # x:  (TILE_M, F)   rows of the flattened (B*S, F) input
    # w1: (H, F)        lin1 weight, torch (out_features, in_features) layout
    # b1: (H, 1)        lin1 bias as a column
    # w2: (H, 1)        lin2 weight as a column
    # b2: (1, 1)        lin2 bias, SMEM scalar
    # o:  (1, TILE_M)   lane-dense per-row predictions for this tile
    x = x_ref[...]

    # lin1, computed transposed so the tile's row axis lands on lanes:
    #   hT[k, m] = sum_f w1[k, f] * x[m, f]
    h_t = jax.lax.dot_general(
        w1_ref[...], x,
        dimension_numbers=(((1,), (1,)), ((), ())),
        preferred_element_type=jnp.float32,
    )                                                   # (H, TILE_M) on the MXU
    h_t = jnp.maximum(h_t + b1_ref[...], 0.0)           # bias + ReLU on the VPU
    # TODO(synk): nn.Dropout is identity at inference time; no RNG mask applied.

    # lin2 (out_features == 1): VPU broadcast-multiply + sublane reduction;
    # the result is naturally lane-dense.
    pred = jnp.sum(h_t * w2_ref[...], axis=0, keepdims=True) + b2_ref[0, 0]
    o_ref[...] = pred.astype(o_ref.dtype)


def pre_predictions_forward(x, w1, b1, w2, b2, *, max_tile_m=_MAX_TILE_M):
    """x: (B, S, F) f32; w1: (H, F); b1: (H,); w2: (1, H); b2: (1,) -> (B, S)."""
    B, S, F = x.shape
    H = w1.shape[0]
    M = B * S

    # Row tile: a multiple of 128 (lane-dense output), capped so that the
    # double-buffered x tile stays well under the scoped-VMEM defaults of all
    # TPU generations (v5e 16 MiB / v6e 32 MiB / v7x 32 MiB).
    tile_m = min(max_tile_m, ((M + _LANE - 1) // _LANE) * _LANE)
    num_tiles = pl.cdiv(M, tile_m)
    m_pad = num_tiles * tile_m

    x2d = x.reshape(M, F)
    if m_pad != M:
        x2d = jnp.pad(x2d, ((0, m_pad - M), (0, 0)))

    w1_hf = w1.reshape(H, F)
    b1_col = b1.reshape(H, 1)
    w2_col = w2.reshape(H, 1)
    b2_s = b2.reshape(1, 1)

    # NOTE: for tiny problems (M << 1024) the fixed pallas_call overhead
    # dominates; a production wrapper would dispatch to plain XLA there.
    out = pl.pallas_call(
        _pre_predictions_kernel,
        out_shape=jax.ShapeDtypeStruct((num_tiles, tile_m), jnp.float32),
        grid=(num_tiles,),
        in_specs=[
            pl.BlockSpec((tile_m, F), lambda i: (i, 0)),        # streamed x tiles
            pl.BlockSpec((H, F), lambda i: (0, 0)),             # resident weights
            pl.BlockSpec((H, 1), lambda i: (0, 0)),
            pl.BlockSpec((H, 1), lambda i: (0, 0)),
            pl.BlockSpec(memory_space=pltpu.MemorySpace.SMEM),  # b2 scalar
        ],
        out_specs=pl.BlockSpec((1, tile_m), lambda i: (i, 0)),
        compiler_params=pltpu.CompilerParams(
            dimension_semantics=("parallel",),
        ),
    )(x2d, w1_hf, b1_col, w2_col, b2_s)

    # (num_tiles, tile_m) -> flat rows -> drop padding -> (B, S)   [squeeze(2)]
    return out.reshape(m_pad)[:M].reshape(B, S)


def _reference(x, w1, b1, w2, b2):
    h = jax.nn.relu(jnp.einsum("bsf,hf->bsh", x, w1) + b1)
    p = jnp.einsum("bsh,oh->bso", h, w2) + b2
    return p[..., 0]


if __name__ == "__main__":
    # Small shapes consistent with the module: batch=2, seq=8, feat_dim=32
    # (configs.use_tsam = False -> feat_dim stays 32; hidden = feat_dim // 2).
    B, S, FEAT = 2, 8, 32
    HID = FEAT // 2

    key = jax.random.PRNGKey(0)
    kx, kw1, kb1, kw2, kb2 = jax.random.split(key, 5)

    x = jax.random.normal(kx, (B, S, FEAT), dtype=jnp.float32)
    # Parameters in the native nn.Linear layout: weight (out_features, in_features).
    w1 = jax.random.normal(kw1, (HID, FEAT), dtype=jnp.float32) * 0.1
    b1 = jax.random.normal(kb1, (HID,), dtype=jnp.float32) * 0.1
    w2 = jax.random.normal(kw2, (1, HID), dtype=jnp.float32) * 0.1
    b2 = jax.random.normal(kb2, (1,), dtype=jnp.float32) * 0.1

    out = pre_predictions_forward(x, w1, b1, w2, b2)
    out = jax.block_until_ready(out)

    ref = _reference(x, w1, b1, w2, b2)
    assert out.shape == (B, S), out.shape
    assert jnp.allclose(out, ref, atol=1e-4, rtol=1e-4), "mismatch vs reference"

    print("KERNEL_OK")
</pallas_src>

<mosaic_0001>
module attributes {stable_mosaic.version = 11 : i64} {
  func.func @_pre_predictions_kernel(%arg0: i32, %arg1: memref<128x32xf32, #tpu.memory_space<vmem>>, %arg2: memref<16x32xf32, #tpu.memory_space<vmem>>, %arg3: memref<16x1xf32, #tpu.memory_space<vmem>>, %arg4: memref<16x1xf32, #tpu.memory_space<vmem>>, %arg5: memref<1x1xf32, #tpu.memory_space<smem>>, %arg6: memref<1x128xf32, #tpu.memory_space<vmem>>) attributes {dimension_semantics = [#tpu.dimension_semantics<parallel>], iteration_bounds = array<i64: 1>, scalar_prefetch = 0 : i64, scratch_operands = 0 : i64, tpu.core_type = #tpu.core_type<tc>, window_params = [{transform_indices = @transform_0, window_bounds = array<i64: 128, 32>}, {pipeline_mode = #tpu.pipeline_mode<synchronous>, transform_indices = @transform_1, window_bounds = array<i64: 16, 32>}, {pipeline_mode = #tpu.pipeline_mode<synchronous>, transform_indices = @transform_2, window_bounds = array<i64: 16, 1>}, {pipeline_mode = #tpu.pipeline_mode<synchronous>, transform_indices = @transform_3, window_bounds = array<i64: 16, 1>}, {transform_indices = @transform_4, window_bounds = array<i64: 1, 1>}, {transform_indices = @transform_5, window_bounds = array<i64: 1, 128>}]} {
    %c0 = arith.constant 0 : index
    %c0_0 = arith.constant 0 : index
    %0 = vector.load %arg1[%c0, %c0_0] : memref<128x32xf32, #tpu.memory_space<vmem>>, vector<128x32xf32>
    %c0_1 = arith.constant 0 : index
    %c0_2 = arith.constant 0 : index
    %1 = vector.load %arg2[%c0_1, %c0_2] : memref<16x32xf32, #tpu.memory_space<vmem>>, vector<16x32xf32>
    %cst = arith.constant dense<0.000000e+00> : vector<16x128xf32>
    %2 = tpu.matmul %1, %0, %cst {dimension_numbers = #tpu.dot_dimension_numbers<[1], [1], [0], [0], [0, 0, 1, 0], [], []>} : vector<16x32xf32>, vector<128x32xf32>, vector<16x128xf32> -> vector<16x128xf32>
    %c0_3 = arith.constant 0 : index
    %c0_4 = arith.constant 0 : index
    %3 = vector.load %arg3[%c0_3, %c0_4] : memref<16x1xf32, #tpu.memory_space<vmem>>, vector<16x1xf32>
    %4 = vector.broadcast %3 : vector<16x1xf32> to vector<16x128xf32>
    %5 = arith.addf %2, %4 : vector<16x128xf32>
    %cst_5 = arith.constant 0.000000e+00 : f32
    %6 = vector.broadcast %cst_5 : f32 to vector<16x128xf32>
    %7 = arith.maximumf %5, %6 : vector<16x128xf32>
    %c0_6 = arith.constant 0 : index
    %c0_7 = arith.constant 0 : index
    %8 = vector.load %arg4[%c0_6, %c0_7] : memref<16x1xf32, #tpu.memory_space<vmem>>, vector<16x1xf32>
    %9 = vector.broadcast %8 : vector<16x1xf32> to vector<16x128xf32>
    %10 = arith.mulf %7, %9 : vector<16x128xf32>
    %cst_8 = arith.constant dense<0.000000e+00> : vector<128xf32>
    %11 = vector.multi_reduction <add>, %10, %cst_8 [0] : vector<16x128xf32> to vector<128xf32>
    %12 = vector.shape_cast %11 : vector<128xf32> to vector<1x128xf32>
    %c0_9 = arith.constant 0 : index
    %c0_10 = arith.constant 0 : index
    %13 = memref.load %arg5[%c0_9, %c0_10] : memref<1x1xf32, #tpu.memory_space<smem>>
    %14 = vector.broadcast %13 : f32 to vector<1x128xf32>
    %15 = arith.addf %12, %14 : vector<1x128xf32>
    %c0_11 = arith.constant 0 : index
    %c0_12 = arith.constant 0 : index
    %16 = vector.load %arg6[%c0_11, %c0_12] : memref<1x128xf32, #tpu.memory_space<vmem>>, vector<1x128xf32>
    tpu.vector_store %arg6[%c0_11, %c0_12], %15 {strides = array<i32>} : memref<1x128xf32, #tpu.memory_space<vmem>>, vector<1x128xf32>,
    return
  }
  func.func @transform_0(%arg0: i32) -> (i32, i32) {
    %c0_i32 = arith.constant 0 : i32
    %c0_i32_0 = arith.constant 0 : i32
    return %arg0, %c0_i32 : i32, i32
  }
  func.func @transform_1(%arg0: i32) -> (i32, i32) {
    %c0_i32 = arith.constant 0 : i32
    %c0_i32_0 = arith.constant 0 : i32
    %c0_i32_1 = arith.constant 0 : i32
    return %c0_i32, %c0_i32_0 : i32, i32
  }
  func.func @transform_2(%arg0: i32) -> (i32, i32) {
    %c0_i32 = arith.constant 0 : i32
    %c0_i32_0 = arith.constant 0 : i32
    %c0_i32_1 = arith.constant 0 : i32
    return %c0_i32, %c0_i32_0 : i32, i32
  }
  func.func @transform_3(%arg0: i32) -> (i32, i32) {
    %c0_i32 = arith.constant 0 : i32
    %c0_i32_0 = arith.constant 0 : i32
    %c0_i32_1 = arith.constant 0 : i32
    return %c0_i32, %c0_i32_0 : i32, i32
  }
  func.func @transform_4(%arg0: i32) -> (i32, i32) {
    %c0_i32 = arith.constant 0 : i32
    %c0_i32_0 = arith.constant 0 : i32
    %c0_i32_1 = arith.constant 0 : i32
    return %c0_i32, %c0_i32_0 : i32, i32
  }
  func.func @transform_5(%arg0: i32) -> (i32, i32) {
    %c0_i32 = arith.constant 0 : i32
    %c0_i32_0 = arith.constant 0 : i32
    return %arg0, %c0_i32 : i32, i32
  }
}

</mosaic_0001>

<llo_original>
// kernel: tpu_custom_call.1
$region0: #{tpu_custom_call.1}
  #allocation0 [shape = 'u32[]', space=smem, size = 0x4, offset = 0x4, fixed_abs, tag = 'smem constant byte address 0x4 - core index']
  #allocation1 [shape = 'u32[72,128]{1,0:T(1,128)}', space=vmem, size = 0x9000, scoped, tag = 'internal scratch']
  #allocation2 [shape = 'f32[1,1]{1,0:T(1,128)S(6)}', space=smem, size = 0x200, scoped, tag = 'scoped memory for tpu_custom_call.1']
  %s0 = inlined_call_operand.vmem [shape: f32[128,32], index: 0, kind: input, shape index: {}]
  %s1 = inlined_call_operand.vmem [shape: f32[16,32], index: 1, kind: input, shape index: {}]
  %s2 = inlined_call_operand.vmem [shape: f32[16,1], index: 2, kind: input, shape index: {}]
  %s3 = inlined_call_operand.vmem [shape: f32[16,1], index: 3, kind: input, shape index: {}]
  %s4 = inlined_call_operand.<no memory space> [shape: f32[1,1], index: 4, kind: input, shape index: {}]
  %s5 = inlined_call_operand.hbm [shape: f32[1,128], index: 5, kind: output, shape index: {}]
  %s6 = sld [smem:[#allocation0]]
  $region30: #{tpu_custom_call.1} parent=0
    _
  %s8 = ssub.s32 1, %s6
  %s9 = scalar_select 0, %s8, %s6
  %10 = sst [smem:[#allocation2]] %s4
  $region1: #{tpu_custom_call.1} parent=0
    #allocation3 [shape = 'u8[512]{0}', space=vmem, size = 0x400, scoped, tag = 'output window, operand 0, single buffered']
    #allocation4 [shape = 's32[1]{0}', space=sflag, size = 0x4, scoped, tag = 'scoped memory for tpu_custom_call.1']
    %11 = vsyncpa [#allocation4], 0
    // Predicated region
    $region2: #{tpu_custom_call.1} parent=1 // pred_check
      _
    $region3: #{tpu_custom_call.1} parent=1 // pred_check_branch
      %13 = sbr.rel (0) target = $region5
    $region4: #{tpu_custom_call.1} parent=1 // pred_region
      _
    $region5: #{tpu_custom_call.1} parent=1 // pred_fallthru
      _
    // Predicated region
    $region6: #{tpu_custom_call.1} parent=1 // pred_check
      _
    $region7: #{tpu_custom_call.1} parent=1 // pred_check_branch
      %15 = sbr.rel (0) target = $region9
    $region8: #{tpu_custom_call.1} parent=1 // pred_region
      _
    $region9: #{tpu_custom_call.1} parent=1 // pred_fallthru
      _
    // Predicated region
    $region10: #{tpu_custom_call.1} parent=1 // pred_check
      _
    $region11: #{tpu_custom_call.1} parent=1 // pred_check_branch
      %17 = sbr.rel (0) target = $region13
    $region12: #{tpu_custom_call.1} parent=1 // pred_region
      _
    $region13: #{tpu_custom_call.1} parent=1 // pred_fallthru
      _
    // Predicated region
    $region14: #{tpu_custom_call.1} parent=1 // pred_check
      _
    $region15: #{tpu_custom_call.1} parent=1 // pred_check_branch
      %19 = sbr.rel (0) target = $region17
    $region16: #{tpu_custom_call.1} parent=1 // pred_region
      _
    $region17: #{tpu_custom_call.1} parent=1 // pred_fallthru
      _
    // Predicated region
    $region18: #{tpu_custom_call.1} parent=1 // pred_check
      _
    $region19: #{tpu_custom_call.1} parent=1 // pred_check_branch
      %21 = sbr.rel (0) target = $region21
    $region20: #{tpu_custom_call.1} parent=1 // pred_region
      _
    $region21: #{tpu_custom_call.1} parent=1 // pred_fallthru
      _
    %v22 = vld [vmem:[%s0] sm:$0xff]
    %v23 = vld [vmem:[%s0 + $0x8] sm:$0xff]
    %v24 = vld [vmem:[%s0 + $0x10] sm:$0xff]
    %v25 = vld [vmem:[%s0 + $0x18] sm:$0xff]
    %v26 = vld [vmem:[%s0 + $0x20] sm:$0xff]
    %v27 = vld [vmem:[%s0 + $0x28] sm:$0xff]
    %v28 = vld [vmem:[%s0 + $0x30] sm:$0xff]
    %v29 = vld [vmem:[%s0 + $0x38] sm:$0xff]
    %v30 = vld [vmem:[%s0 + $0x40] sm:$0xff]
    %v31 = vld [vmem:[%s0 + $0x48] sm:$0xff]
    %v32 = vld [vmem:[%s0 + $0x50] sm:$0xff]
    %v33 = vld [vmem:[%s0 + $0x58] sm:$0xff]
    %v34 = vld [vmem:[%s0 + $0x60] sm:$0xff]
    %v35 = vld [vmem:[%s0 + $0x68] sm:$0xff]
    %v36 = vld [vmem:[%s0 + $0x70] sm:$0xff]
    %v37 = vld [vmem:[%s0 + $0x78] sm:$0xff]
    %v38 = vld [vmem:[%s1] sm:$0xff]
    %v39 = vld [vmem:[%s1 + $0x8] sm:$0xff]
    %v40 = vld [vmem:[%s2] sm:$0xff]
    %v41 = vld [vmem:[%s2 + $0x8] sm:$0xff]
    %43 = vset.pattern.permute.xlu0 0
    %44 = vperm.xlu0 %43, %v40
    %v45 = vpop.permute.xlu0 %44
    %48 = vset.pattern.permute.xlu0 0
    %49 = vperm.xlu0 %48, %v41
    %v50 = vpop.permute.xlu0 %49
    %vm52 = vcmask 261120
    %v54 = vsel %vm52, %v38, 0
    %v57 = vsel %vm52, %v39, 0
    %v60 = vsel %vm52, %v22, 0
    %v63 = vsel %vm52, %v23, 0
    %v66 = vsel %vm52, %v24, 0
    %v69 = vsel %vm52, %v25, 0
    %v72 = vsel %vm52, %v26, 0
    %v75 = vsel %vm52, %v27, 0
    %v78 = vsel %vm52, %v28, 0
    %v81 = vsel %vm52, %v29, 0
    %v84 = vsel %vm52, %v30, 0
    %v87 = vsel %vm52, %v31, 0
    %v90 = vsel %vm52, %v32, 0
    %v93 = vsel %vm52, %v33, 0
    %v96 = vsel %vm52, %v34, 0
    %v99 = vsel %vm52, %v35, 0
    %v102 = vsel %vm52, %v36, 0
    %v105 = vsel %vm52, %v37, 0
    %107 = vmatpush.xpose.msra.mxu0 %v105
    %108 = vmatpush.xpose.msra.mxu0 %v102
    %109 = vmatpush.xpose.msra.mxu0 %v99
    %110 = vmatpush.xpose.msra.mxu0 %v96
    %111 = vmatpush.xpose.msra.mxu0 %v93
    %112 = vmatpush.xpose.msra.mxu0 %v90
    %113 = vmatpush.xpose.msra.mxu0 %v87
    %114 = vmatpush.xpose.msra.mxu0 %v84
    %115 = vmatpush.xpose.msra.mxu0 %v81
    %116 = vmatpush.xpose.msra.mxu0 %v78
    %117 = vmatpush.xpose.msra.mxu0 %v75
    %118 = vmatpush.xpose.msra.mxu0 %v72
    %119 = vmatpush.xpose.msra.mxu0 %v69
    %120 = vmatpush.xpose.msra.mxu0 %v66
    %121 = vmatpush.xpose.msra.mxu0 %v63
    %122 = vmatpush.xpose.msra.mxu0 %v60
    %123 = vmatmul.f32.gmra.mxu0 %v54
    %v124 = vpop.f32.mrf.mxu0
    %v125 = vadd.f32 %v45, %v124
    %126 = vmatmul.f32.gmra.mxu0 %v57
    %v127 = vpop.f32.mrf.mxu0
    %v128 = vadd.f32 %v50, %v127
    %129 = vdwg.mxu0
    %v130 = vmax.f32 %v125, 0.0
    %v131 = vmax.f32 %v128, 0.0
    %v132 = vld [vmem:[%s3] sm:$0xff]
    %v133 = vld [vmem:[%s3 + $0x8] sm:$0xff]
    %135 = vset.pattern.permute.xlu0 0
    %136 = vperm.xlu0 %135, %v132
    %v137 = vpop.permute.xlu0 %136
    %140 = vset.pattern.permute.xlu0 0
    %141 = vperm.xlu0 %140, %v133
    %v142 = vpop.permute.xlu0 %141
    %v144 = vmul.f32 %v130, %v137
    %v145 = vmul.f32 %v131, %v142
    %v146 = vadd.f32 %v144, %v145
    %v147 = vrot.slane %v146, 4
    %v148 = vadd.f32 %v146, %v147
    %v149 = vrot.slane %v148, 2
    %v150 = vadd.f32 %v148, %v149
    %v151 = vrot.slane %v150, 1
    %v152 = vadd.f32 %v150, %v151
    %s153 = sld [smem:[#allocation2]]
    %v154 = vstv %s153
    %v155 = vadd.f32 %v152, %v154
    %156 = vst [vmem:[#allocation3] sm:$0x1] %v155
    // Predicated region
    $region22: #{tpu_custom_call.1} parent=1 // pred_check
      _
    $region23: #{tpu_custom_call.1} parent=1 // pred_check_branch
      %158 = sbr.rel (0) target = $region25
    $region24: #{tpu_custom_call.1} parent=1 // pred_region
      %160 = vsyncadd [#allocation4], 0
      %s162 = sshll.u32 [#allocation3], 4
      %s163 = int_to_ptr.vmem [resolvable:$true] %s162
      %s164 = sshll.u32 %s5, 4
      %s165 = int_to_ptr.hbm [resolvable:$true] %s164
      %167 = dma.vmem_to_hbm [thread:$0]  %s163, 16, %s165, [#allocation4]
    $region25: #{tpu_custom_call.1} parent=1 // pred_fallthru
      _
    // Predicated region
    $region26: #{tpu_custom_call.1} parent=1 // pred_check
      _
    $region27: #{tpu_custom_call.1} parent=1 // pred_check_branch
      %169 = sbr.rel (0) target = $region29
    $region28: #{tpu_custom_call.1} parent=1 // pred_region
      %171 = dma.done [#allocation4], 16
    $region29: #{tpu_custom_call.1} parent=1 // pred_fallthru
      _
    %172 = vsyncpa [#allocation4], 1

</llo_original>
